<compile_context>
chip_gen: v7x
topology: tpu7x:2x2x1
jax: 0.10.0
libtpu: 0.0.40
codegen_flags: <defaults>
</compile_context>

<pallas_src>
import jax
import jax.numpy as jnp
from jax.experimental import pallas as pl
from jax.experimental.pallas import tpu as pltpu


def _copy_kernel(x_ref, o_ref):
    # Lane-dense full-tile copy: one unmasked load + one unmasked store per tile.
    o_ref[...] = x_ref[...]


def pixel_shuffler(x, shuffle_size=2):
    """(N, C, W) -> (N, C // shuffle_size, W * shuffle_size).

    Matches the PyTorch module's contiguous `reshape` exactly.
    """
    n, c, w = x.shape
    r = shuffle_size
    assert c % r == 0, "C must be divisible by shuffle_size"
    c_out, w_out = c // r, w * r

    total = n * c * w
    itemsize = jnp.dtype(x.dtype).itemsize

    # ---- pick a lane-dense 2D view (rows, lane) of the flat data -----------
    # Prefer a large, 128-aligned lane width so stores are unmasked `vst`.
    lane = None
    for cand in (2048, 1024, 512, 256, 128):
        if total % cand == 0:
            lane = cand
            break

    if lane is None:
        # Unaligned total (rare / tiny shapes): one full (C*W) slab per batch
        # element.  Trailing block dim equals the full array dim, so the TPU
        # tiling rule is still satisfied (stores may be masked, but correct).
        rows, lane = n, c * w
        block_rows = 1
    else:
        rows = total // lane
        # ~2 MiB per buffer => double-buffered in + out ~ 8 MiB, comfortably
        # inside the scoped-VMEM limit on v5e / v6e / v7x.
        target_block_bytes = 2 * 1024 * 1024
        block_rows = max(1, target_block_bytes // (lane * itemsize))
        block_rows = min(block_rows, rows)
        # Keep sublane alignment when not covering the whole rows axis.
        if block_rows != rows and block_rows >= 8:
            block_rows = (block_rows // 8) * 8

    grid = (pl.cdiv(rows, block_rows),)

    flat_in = x.reshape(rows, lane)

    out_flat = pl.pallas_call(
        _copy_kernel,
        out_shape=jax.ShapeDtypeStruct((rows, lane), x.dtype),
        grid=grid,
        in_specs=[pl.BlockSpec((block_rows, lane), lambda i: (i, 0))],
        out_specs=pl.BlockSpec((block_rows, lane), lambda i: (i, 0)),
        compiler_params=pltpu.CompilerParams(
            dimension_semantics=("parallel",),   # lets v7x shard across both TCs
            vmem_limit_bytes=32 * 1024 * 1024,
        ),
        cost_estimate=pl.CostEstimate(
            flops=0,
            transcendentals=0,
            bytes_accessed=2 * total * itemsize,
        ),
    )(flat_in)

    return out_flat.reshape(n, c_out, w_out)


if __name__ == "__main__":
    # Small deterministic input consistent with the module's (N, C, W) contract.
    key = jax.random.PRNGKey(0)
    N, C, W = 2, 4, 16
    shuffle_size = 2
    x = jax.random.normal(key, (N, C, W), dtype=jnp.float32)

    out = pixel_shuffler(x, shuffle_size=shuffle_size)
    out = jax.block_until_ready(out)

    # Reference: the PyTorch forward is a contiguous reshape.
    ref = jnp.reshape(x, (N, C // shuffle_size, W * shuffle_size))

    assert out.shape == (N, C // shuffle_size, W * shuffle_size), out.shape
    assert out.dtype == x.dtype
    assert jnp.array_equal(out, ref), "mismatch vs reshape reference"

    print("KERNEL_OK")
</pallas_src>

<mosaic_0001>
module attributes {stable_mosaic.version = 11 : i64} {
  func.func @_copy_kernel(%arg0: i32, %arg1: memref<1x128xf32, #tpu.memory_space<vmem>>, %arg2: memref<1x128xf32, #tpu.memory_space<vmem>>) attributes {dimension_semantics = [#tpu.dimension_semantics<parallel>], iteration_bounds = array<i64: 1>, scalar_prefetch = 0 : i64, scratch_operands = 0 : i64, tpu.core_type = #tpu.core_type<tc>, window_params = [{transform_indices = @transform_0, window_bounds = array<i64: 1, 128>}, {transform_indices = @transform_1, window_bounds = array<i64: 1, 128>}]} {
    %c0 = arith.constant 0 : index
    %c0_0 = arith.constant 0 : index
    %0 = vector.load %arg1[%c0, %c0_0] : memref<1x128xf32, #tpu.memory_space<vmem>>, vector<1x128xf32>
    %c0_1 = arith.constant 0 : index
    %c0_2 = arith.constant 0 : index
    %1 = vector.load %arg2[%c0_1, %c0_2] : memref<1x128xf32, #tpu.memory_space<vmem>>, vector<1x128xf32>
    tpu.vector_store %arg2[%c0_1, %c0_2], %0 {strides = array<i32>} : memref<1x128xf32, #tpu.memory_space<vmem>>, vector<1x128xf32>,
    return
  }
  func.func @transform_0(%arg0: i32) -> (i32, i32) {
    %c0_i32 = arith.constant 0 : i32
    %c0_i32_0 = arith.constant 0 : i32
    return %arg0, %c0_i32 : i32, i32
  }
  func.func @transform_1(%arg0: i32) -> (i32, i32) {
    %c0_i32 = arith.constant 0 : i32
    %c0_i32_0 = arith.constant 0 : i32
    return %arg0, %c0_i32 : i32, i32
  }
}

</mosaic_0001>

<llo_original>
// kernel: tpu_custom_call.1
$region0: #{tpu_custom_call.1}
  #allocation0 [shape = 'u32[]', space=smem, size = 0x4, offset = 0x4, fixed_abs, tag = 'smem constant byte address 0x4 - core index']
  #allocation1 [shape = 'u32[144,128]{1,0:T(1,128)}', space=vmem, size = 0x12000, scoped, tag = 'internal scratch']
  %s0 = inlined_call_operand.hbm [shape: f32[1,128], index: 0, kind: input, shape index: {}]
  %s1 = inlined_call_operand.hbm [shape: f32[1,128], index: 1, kind: output, shape index: {}]
  %s2 = sld [smem:[#allocation0]]
  $region18: #{tpu_custom_call.1} parent=0
    _
  %s4 = ssub.s32 1, %s2
  %s5 = scalar_select 0, %s4, %s2
  $region1: #{tpu_custom_call.1} parent=0
    #allocation2 [shape = 'u8[512]{0}', space=vmem, size = 0x400, scoped, tag = 'input window, operand 0, single buffered']
    #allocation3 [shape = 's32[1]{0}', space=sflag, size = 0x4, scoped, tag = 'scoped memory for tpu_custom_call.1']
    #allocation4 [shape = 's32[1]{0}', space=sflag, size = 0x4, scoped, tag = 'scoped memory for tpu_custom_call.1']
    #allocation5 [shape = 'u8[512]{0}', space=vmem, size = 0x400, scoped, tag = 'output window, operand 0, single buffered']
    %6 = vsyncpa [#allocation3], 0
    %7 = vsyncpa [#allocation4], 0
    // Predicated region
    $region2: #{tpu_custom_call.1} parent=1 // pred_check
      _
    $region3: #{tpu_custom_call.1} parent=1 // pred_check_branch
      %9 = sbr.rel (0) target = $region5
    $region4: #{tpu_custom_call.1} parent=1 // pred_region
      %s11 = ssub.s32 16, 16
      %12 = vsyncadd [#allocation3], %s11
      %s14 = sshll.u32 [#allocation2], 4
      %s15 = int_to_ptr.vmem [resolvable:$true] %s14
      %17 = dma.hbm_to_vmem [thread:$0]  %s0, 16, %s15, [#allocation3]
    $region5: #{tpu_custom_call.1} parent=1 // pred_fallthru
      _
    // Predicated region
    $region6: #{tpu_custom_call.1} parent=1 // pred_check
      _
    $region7: #{tpu_custom_call.1} parent=1 // pred_check_branch
      %19 = sbr.rel (0) target = $region9
    $region8: #{tpu_custom_call.1} parent=1 // pred_region
      %20 = dma.done [#allocation3], 16
    $region9: #{tpu_custom_call.1} parent=1 // pred_fallthru
      _
    %v21 = vld [vmem:[#allocation2] sm:$0x1]
    %22 = vst [vmem:[#allocation5] sm:$0x1] %v21
    // Predicated region
    $region10: #{tpu_custom_call.1} parent=1 // pred_check
      _
    $region11: #{tpu_custom_call.1} parent=1 // pred_check_branch
      %24 = sbr.rel (0) target = $region13
    $region12: #{tpu_custom_call.1} parent=1 // pred_region
      %s26 = ssub.s32 16, 16
      %27 = vsyncadd [#allocation4], %s26
      %s29 = sshll.u32 [#allocation5], 4
      %s30 = int_to_ptr.vmem [resolvable:$true] %s29
      %32 = dma.vmem_to_hbm [thread:$0]  %s30, 16, %s1, [#allocation4]
    $region13: #{tpu_custom_call.1} parent=1 // pred_fallthru
      _
    // Predicated region
    $region14: #{tpu_custom_call.1} parent=1 // pred_check
      _
    $region15: #{tpu_custom_call.1} parent=1 // pred_check_branch
      %34 = sbr.rel (0) target = $region17
    $region16: #{tpu_custom_call.1} parent=1 // pred_region
      %35 = dma.done [#allocation4], 16
    $region17: #{tpu_custom_call.1} parent=1 // pred_fallthru
      _
    %36 = vsyncpa [#allocation3], 1
    %37 = vsyncpa [#allocation4], 1

</llo_original>
